<compile_context>
chip_gen: v5e
topology: v5e:2x2
jax: 0.10.0
libtpu: 0.0.40
codegen_flags: <defaults>
</compile_context>

<pallas_src>
import functools

import jax
import jax.numpy as jnp
from jax.experimental import pallas as pl
from jax.experimental.pallas import tpu as pltpu


_VMEM_BUDGET = 24 * 1024 * 1024   # target double-buffered working set per pass
_VMEM_LIMIT = 40 * 1024 * 1024    # < 64 MiB physical on v7x, well under v5e/v6e


def _round_up(a, b):
    return (a + b - 1) // b * b


def _pick_tiles(m, kd, c2p):
    """Tile sizes for pass 1 (matmul + stats) and pass 2 (BN apply + SiLU)."""
    # --- K axis: no padding when Kd fits a single block (full-dim exemption). ---
    if kd <= 2048:
        kdp, tk = kd, kd
    else:
        kdp = _round_up(kd, 128)
        tk = next(t for t in (512, 256, 128) if kdp % t == 0)
    gk = kdp // tk

    # --- N axis: keep all of C2p resident (weight streamed once, wide MXU RHS). ---
    if tk * c2p * 2 <= 4 * 1024 * 1024:
        tn = c2p
    else:
        tn = next(t for t in (512, 256, 128) if c2p % t == 0)
    gn = c2p // tn

    # --- M axis: as many rows as the VMEM budget allows (also bounded by pass 2). ---
    rows2 = max(8, _VMEM_BUDGET // (12 * c2p) // 8 * 8)   # pass 2: 2x bf16 in + 2x f32 out
    w_bytes = 2 * tk * tn * 2                             # double-buffered weight tile
    per_row = 4 * tk + 4 * tn + (4 * tn if gk > 1 else 0)
    tm = max(8, (_VMEM_BUDGET - w_bytes) // per_row // 8 * 8)
    tm = min(tm, 1024, rows2, _round_up(m, 8))
    # Prefer >= 2 M tiles so both v7x TensorCores get work on the "parallel" axis.
    if _round_up(m, tm) == tm and m > 256:
        tm = _round_up((m + 1) // 2, 8)
    mp = _round_up(m, tm)
    gm = mp // tm

    # --- pass-2 M tile: a multiple of tm (so it divides mp), up to the row cap,
    #     while keeping >= 2 grid steps whenever pass 1 had >= 2. ---
    cap = min(rows2, 2048)
    f_best = 1
    for f in range(1, max(1, min(gm, cap // tm)) + 1):
        if gm % f == 0 and tm * f <= cap and gm // f >= min(gm, 2):
            f_best = f
    tm2 = tm * f_best
    return kdp, tk, gk, tn, gn, tm, mp, gm, tm2


# --------------------- pass 1: conv-as-matmul + partial BN statistics ---------------------
def _conv_stats_kernel(p_ref, w_ref, y_ref, sum_ref, sq_ref, *acc,
                       m_valid, tm, single_k):
    # p_ref:   [tm, tk]    bf16 im2col patch tile
    # w_ref:   [tk, tn]    bf16 flattened conv weight tile
    # y_ref:   [tm, tn]    bf16 conv output tile (cast from the f32 accumulation)
    # sum_ref: [1, 1, tn]  f32 partial sum(y)      over the valid rows of this M tile
    # sq_ref:  [1, 1, tn]  f32 partial sum(y^2)    over the valid rows of this M tile
    # acc:     ()          when Kd fits one block, else (acc_ref,) f32 [tm, tn] scratch
    i = pl.program_id(0)

    def epilogue(y):
        # y: [tm, tn] f32 conv result. Stats are taken BEFORE the bf16 cast so the
        # batch mean/var stay exact; padded M rows are masked out.
        y_ref[...] = y.astype(y_ref.dtype)
        row = i * tm + jax.lax.broadcasted_iota(jnp.int32, (tm, 1), 0)
        valid = (row < m_valid).astype(jnp.float32)                   # [tm, 1] of {0,1}
        yv = y * valid
        sum_ref[...] = jnp.sum(yv, axis=0, keepdims=True)[None]       # [1, 1, tn]
        sq_ref[...] = jnp.sum(yv * y, axis=0, keepdims=True)[None]    # [1, 1, tn]

    if single_k:
        # Common case: whole Kd in one block -> no scratch accumulator, no k bookkeeping.
        epilogue(jnp.dot(p_ref[...], w_ref[...], preferred_element_type=jnp.float32))
    else:
        # Kd is tiled: y is bf16 so the running accumulation must stay in f32 scratch.
        acc_ref, = acc
        k = pl.program_id(2)

        @pl.when(k == 0)
        def _():
            acc_ref[...] = jnp.zeros_like(acc_ref)

        acc_ref[...] += jnp.dot(p_ref[...], w_ref[...],
                                preferred_element_type=jnp.float32)

        @pl.when(k == pl.num_programs(2) - 1)
        def _():
            epilogue(acc_ref[...])


# ------------------------------ pass 2: fused BN apply + SiLU ------------------------------
def _bn_silu_kernel(y_ref, scale_ref, shift_ref, o_ref):
    yn = y_ref[...].astype(jnp.float32) * scale_ref[...] + shift_ref[...]
    o_ref[...] = (yn * jax.nn.sigmoid(yn)).astype(o_ref.dtype)


def conv_resnext_pallas(x_nchw, weight, gamma, beta, *, stride, padding,
                        dilation=1, groups=1, eps=1e-5, mxu_dtype=jnp.bfloat16):
    """Forward of ConvResNext (groups=1) with two tiled Pallas TPU kernels.

    x_nchw: [N, C1, H, W] f32, weight: [C2, C1, KH, KW] f32 (PyTorch layout, no bias),
    gamma/beta: [C2] BatchNorm2d affine params. Returns [N, C2, OH, OW] f32.
    Training-mode BatchNorm semantics (batch statistics), matching a fresh nn.Module.
    """
    n, c1, h, w = x_nchw.shape
    c2, c1w, kh, kw = weight.shape
    assert groups == 1 and c1 == c1w, "groups != 1 not supported"
    # TODO(synk): grouped conv (g > 1) needs block-diagonal weight tiling.

    oh = (h + 2 * padding - dilation * (kh - 1) - 1) // stride + 1
    ow = (w + 2 * padding - dilation * (kw - 1) - 1) // stride + 1
    m = n * oh * ow
    kd = kh * kw * c1
    c2p = _round_up(c2, 128)

    kdp, tk, gk, tn, gn, tm, mp, gm, tm2 = _pick_tiles(m, kd, c2p)
    single_k = (gk == 1)

    # --- glue: NCHW -> NHWC (bf16), pad, im2col patches [M, Kd] ordered (kh, kw, c1) ---
    # TODO(synk): replace with an in-kernel (kh, kw) accumulation grid axis over the
    #             padded NHWC input to avoid the kh*kw-duplicated HBM read.
    x_nhwc = jnp.transpose(x_nchw, (0, 2, 3, 1)).astype(mxu_dtype)
    x_pad = jnp.pad(x_nhwc, ((0, 0), (padding, padding), (padding, padding), (0, 0)))
    patch_list = []
    for i in range(kh):
        for j in range(kw):
            hi, wj = i * dilation, j * dilation
            patch_list.append(
                x_pad[:, hi:hi + (oh - 1) * stride + 1:stride,
                      wj:wj + (ow - 1) * stride + 1:stride, :])       # [N, OH, OW, C1]
    patches = jnp.concatenate(patch_list, axis=-1).reshape(m, kd)
    patches = jnp.pad(patches, ((0, mp - m), (0, kdp - kd)))          # [Mp, Kdp] bf16

    # weight [C2, C1, KH, KW] -> [KH, KW, C1, C2] -> [Kdp, C2p] bf16
    w2d = jnp.transpose(weight, (2, 3, 1, 0)).reshape(kd, c2).astype(mxu_dtype)
    w2d = jnp.pad(w2d, ((0, kdp - kd), (0, c2p - c2)))

    # ----------------------- pass 1: conv matmul + partial BN stats -----------------------
    itemsize = jnp.dtype(mxu_dtype).itemsize
    cost1 = pl.CostEstimate(
        flops=2 * mp * kdp * c2p,
        transcendentals=0,
        bytes_accessed=(mp * kdp * itemsize + kdp * c2p * itemsize
                        + mp * c2p * itemsize + 2 * gm * c2p * 4))
    scratch = [] if single_k else [pltpu.VMEM((tm, tn), jnp.float32)]
    y2d, s_part, ss_part = pl.pallas_call(
        functools.partial(_conv_stats_kernel, m_valid=m, tm=tm, single_k=single_k),
        out_shape=(jax.ShapeDtypeStruct((mp, c2p), mxu_dtype),
                   jax.ShapeDtypeStruct((gm, 1, c2p), jnp.float32),
                   jax.ShapeDtypeStruct((gm, 1, c2p), jnp.float32)),
        grid_spec=pltpu.PrefetchScalarGridSpec(
            num_scalar_prefetch=0,
            grid=(gm, gn, gk),
            in_specs=[
                pl.BlockSpec((tm, tk), lambda i, j, k: (i, k)),
                pl.BlockSpec((tk, tn), lambda i, j, k: (k, j)),
            ],
            out_specs=[
                pl.BlockSpec((tm, tn), lambda i, j, k: (i, j)),
                pl.BlockSpec((1, 1, tn), lambda i, j, k: (i, 0, j)),
                pl.BlockSpec((1, 1, tn), lambda i, j, k: (i, 0, j)),
            ],
            scratch_shapes=scratch,
        ),
        compiler_params=pltpu.CompilerParams(
            dimension_semantics=("parallel", "parallel", "arbitrary"),
            vmem_limit_bytes=_VMEM_LIMIT),
        cost_estimate=cost1,
    )(patches, w2d)

    # --------------- tiny [C2] reduction + fold BN into per-channel scale/shift ------------
    s = jnp.sum(s_part, axis=(0, 1))                      # [C2p]
    ss = jnp.sum(ss_part, axis=(0, 1))                    # [C2p]
    mean = s / m
    var = jnp.maximum(ss / m - mean * mean, 0.0)          # biased variance (train-mode BN)
    gamma_p = jnp.pad(gamma.astype(jnp.float32), (0, c2p - c2))
    beta_p = jnp.pad(beta.astype(jnp.float32), (0, c2p - c2))
    scale = gamma_p * jax.lax.rsqrt(var + eps)
    shift = beta_p - mean * scale
    scale2d = scale.reshape(1, c2p)
    shift2d = shift.reshape(1, c2p)

    # --------------------------- pass 2: fused normalize + SiLU ----------------------------
    gm2 = mp // tm2
    cost2 = pl.CostEstimate(flops=4 * mp * c2p, transcendentals=mp * c2p,
                            bytes_accessed=mp * c2p * (itemsize + 4) + 2 * c2p * 4)
    out2d = pl.pallas_call(
        _bn_silu_kernel,
        out_shape=jax.ShapeDtypeStruct((mp, c2p), jnp.float32),
        grid_spec=pltpu.PrefetchScalarGridSpec(
            num_scalar_prefetch=0,
            grid=(gm2,),
            in_specs=[
                pl.BlockSpec((tm2, c2p), lambda i: (i, 0)),
                pl.BlockSpec((1, c2p), lambda i: (0, 0)),   # resident: fetched once
                pl.BlockSpec((1, c2p), lambda i: (0, 0)),   # resident: fetched once
            ],
            out_specs=pl.BlockSpec((tm2, c2p), lambda i: (i, 0)),
        ),
        compiler_params=pltpu.CompilerParams(
            dimension_semantics=("parallel",),
            vmem_limit_bytes=_VMEM_LIMIT),
        cost_estimate=cost2,
    )(y2d, scale2d, shift2d)

    # --- glue: strip padding, [M, C2] -> [N, OH, OW, C2] -> NCHW ---
    # TODO(synk): fold the NHWC->NCHW transpose into pass 2's out_spec (or keep NHWC
    #             for the downstream consumer) to avoid this extra HBM round trip.
    out = out2d[:m, :c2].reshape(n, oh, ow, c2)
    return jnp.transpose(out, (0, 3, 1, 2))


def _reference_forward(x_nchw, weight, gamma, beta, *, stride, padding, dilation=1,
                       eps=1e-5, conv_dtype=jnp.float32, y_dtype=jnp.float32):
    """Pure-JAX reference: Conv2d (operands optionally rounded to conv_dtype, f32
    accumulation) + BatchNorm2d(train, stats from f32 y, y optionally rounded to
    y_dtype before the affine apply) + SiLU."""
    xc = x_nchw.astype(conv_dtype).astype(jnp.float32)
    wc = weight.astype(conv_dtype).astype(jnp.float32)
    y = jax.lax.conv_general_dilated(
        xc, wc,
        window_strides=(stride, stride),
        padding=((padding, padding), (padding, padding)),
        rhs_dilation=(dilation, dilation),
        dimension_numbers=("NCHW", "OIHW", "NCHW"),
    )
    mean = jnp.mean(y, axis=(0, 2, 3), keepdims=True)
    var = jnp.mean((y - mean) ** 2, axis=(0, 2, 3), keepdims=True)
    scale = gamma.reshape(1, -1, 1, 1) * jax.lax.rsqrt(var + eps)
    shift = beta.reshape(1, -1, 1, 1) - mean * scale
    yq = y.astype(y_dtype).astype(jnp.float32)
    yn = yq * scale + shift
    return yn * jax.nn.sigmoid(yn)


if __name__ == "__main__":
    def _check(n, c1, h, w, c2, k, s, p, d, seed):
        key = jax.random.PRNGKey(seed)
        kx, kw_, kg, kb = jax.random.split(key, 4)
        x = jax.random.normal(kx, (n, c1, h, w), dtype=jnp.float32)
        weight = jax.random.normal(kw_, (c2, c1, k, k), dtype=jnp.float32) * 0.1
        gamma = 1.0 + 0.1 * jax.random.normal(kg, (c2,), dtype=jnp.float32)
        beta = 0.1 * jax.random.normal(kb, (c2,), dtype=jnp.float32)

        out = conv_resnext_pallas(x, weight, gamma, beta, stride=s, padding=p,
                                  dilation=d)
        out = jax.block_until_ready(out)

        oh = (h + 2 * p - d * (k - 1) - 1) // s + 1
        ow = (w + 2 * p - d * (k - 1) - 1) // s + 1
        assert out.shape == (n, c2, oh, ow), out.shape

        # Precision-matched reference (bf16 conv operands + bf16 y intermediate,
        # f32 accumulation / statistics) -> isolates structural errors.
        ref_q = _reference_forward(x, weight, gamma, beta, stride=s, padding=p,
                                   dilation=d, conv_dtype=jnp.bfloat16,
                                   y_dtype=jnp.bfloat16)
        err = float(jnp.max(jnp.abs(out - ref_q)))
        assert jnp.allclose(out, ref_q, rtol=1e-2, atol=1e-2), err
        # Sanity check against the full-f32 PyTorch-equivalent forward.
        ref_f32 = _reference_forward(x, weight, gamma, beta, stride=s, padding=p,
                                     dilation=d)
        err32 = float(jnp.max(jnp.abs(out - ref_f32)))
        assert jnp.allclose(out, ref_f32, rtol=5e-2, atol=5e-2), err32

    # ConvResNext(c1=4, c2=8, k=3, s=1, p=1): M=512 -> two 256-row M tiles, Kd=36
    # kept as a single unpadded K block, weight fully VMEM-resident.
    _check(2, 4, 16, 16, 8, 3, 1, 1, 1, seed=0)
    # Strided / ragged case: M=30 exercises the masking of padded rows in the stats.
    _check(1, 3, 9, 11, 8, 3, 2, 1, 1, seed=1)
    # Large-Kd case (Kd=2160 > 2048): exercises the tiled-K f32 accumulator path.
    _check(1, 240, 6, 6, 16, 3, 1, 1, 1, seed=2)
    print("KERNEL_OK")
</pallas_src>

<mosaic_0001>
module attributes {stable_mosaic.version = 11 : i64} {
  func.func @_conv_stats_kernel(%arg0: i32, %arg1: i32, %arg2: i32, %arg3: memref<256x36xbf16, #tpu.memory_space<vmem>>, %arg4: memref<36x128xbf16, #tpu.memory_space<vmem>>, %arg5: memref<256x128xbf16, #tpu.memory_space<vmem>>, %arg6: memref<1x1x128xf32, #tpu.memory_space<vmem>>, %arg7: memref<1x1x128xf32, #tpu.memory_space<vmem>>) attributes {dimension_semantics = [#tpu.dimension_semantics<parallel>, #tpu.dimension_semantics<parallel>, #tpu.dimension_semantics<arbitrary>], iteration_bounds = array<i64: 2, 1, 1>, scalar_prefetch = 0 : i64, scratch_operands = 0 : i64, tpu.core_type = #tpu.core_type<tc>, window_params = [{transform_indices = @transform_0, window_bounds = array<i64: 256, 36>}, {transform_indices = @transform_1, window_bounds = array<i64: 36, 128>}, {transform_indices = @transform_2, window_bounds = array<i64: 256, 128>}, {transform_indices = @transform_3, window_bounds = array<i64: 1, 1, 128>}, {transform_indices = @transform_4, window_bounds = array<i64: 1, 1, 128>}]} {
    %c0 = arith.constant 0 : index
    %c0_0 = arith.constant 0 : index
    %0 = vector.load %arg3[%c0, %c0_0] : memref<256x36xbf16, #tpu.memory_space<vmem>>, vector<256x36xbf16>
    %c0_1 = arith.constant 0 : index
    %c0_2 = arith.constant 0 : index
    %1 = vector.load %arg4[%c0_1, %c0_2] : memref<36x128xbf16, #tpu.memory_space<vmem>>, vector<36x128xbf16>
    %cst = arith.constant dense<0.000000e+00> : vector<256x128xf32>
    %2 = tpu.matmul %0, %1, %cst {dimension_numbers = #tpu.dot_dimension_numbers<[1], [0], [0], [1], [0, 0, 1, 1], [], []>} : vector<256x36xbf16>, vector<36x128xbf16>, vector<256x128xf32> -> vector<256x128xf32>
    %3 = arith.truncf %2 : vector<256x128xf32> to vector<256x128xbf16>
    %c0_3 = arith.constant 0 : index
    %c0_4 = arith.constant 0 : index
    %4 = vector.load %arg5[%c0_3, %c0_4] : memref<256x128xbf16, #tpu.memory_space<vmem>>, vector<256x128xbf16>
    tpu.vector_store %arg5[%c0_3, %c0_4], %3 {strides = array<i32>} : memref<256x128xbf16, #tpu.memory_space<vmem>>, vector<256x128xbf16>,
    %c256_i32 = arith.constant 256 : i32
    %5 = arith.muli %arg0, %c256_i32 : i32
    %6 = tpu.iota {dimensions = array<i32: 0>} : vector<256x1xi32>
    %7 = vector.broadcast %5 : i32 to vector<256x1xi32>
    %8 = arith.addi %7, %6 : vector<256x1xi32>
    %c512_i32 = arith.constant 512 : i32
    %9 = vector.broadcast %c512_i32 : i32 to vector<256x1xi32>
    %10 = arith.cmpi slt, %8, %9 : vector<256x1xi32>
    %11 = arith.extui %10 : vector<256x1xi1> to vector<256x1xi32>
    %12 = arith.sitofp %11 : vector<256x1xi32> to vector<256x1xf32>
    %13 = vector.broadcast %12 : vector<256x1xf32> to vector<256x128xf32>
    %14 = arith.mulf %2, %13 : vector<256x128xf32>
    %cst_5 = arith.constant dense<0.000000e+00> : vector<128xf32>
    %15 = vector.multi_reduction <add>, %14, %cst_5 [0] : vector<256x128xf32> to vector<128xf32>
    %16 = vector.shape_cast %15 : vector<128xf32> to vector<1x128xf32>
    %17 = vector.shape_cast %16 : vector<1x128xf32> to vector<1x1x128xf32>
    %c0_6 = arith.constant 0 : index
    %c0_7 = arith.constant 0 : index
    %c0_8 = arith.constant 0 : index
    %18 = vector.load %arg6[%c0_6, %c0_7, %c0_8] : memref<1x1x128xf32, #tpu.memory_space<vmem>>, vector<1x1x128xf32>
    tpu.vector_store %arg6[%c0_6, %c0_7, %c0_8], %17 {strides = array<i32>} : memref<1x1x128xf32, #tpu.memory_space<vmem>>, vector<1x1x128xf32>,
    %19 = arith.mulf %14, %2 : vector<256x128xf32>
    %cst_9 = arith.constant dense<0.000000e+00> : vector<128xf32>
    %20 = vector.multi_reduction <add>, %19, %cst_9 [0] : vector<256x128xf32> to vector<128xf32>
    %21 = vector.shape_cast %20 : vector<128xf32> to vector<1x128xf32>
    %22 = vector.shape_cast %21 : vector<1x128xf32> to vector<1x1x128xf32>
    %c0_10 = arith.constant 0 : index
    %c0_11 = arith.constant 0 : index
    %c0_12 = arith.constant 0 : index
    %23 = vector.load %arg7[%c0_10, %c0_11, %c0_12] : memref<1x1x128xf32, #tpu.memory_space<vmem>>, vector<1x1x128xf32>
    tpu.vector_store %arg7[%c0_10, %c0_11, %c0_12], %22 {strides = array<i32>} : memref<1x1x128xf32, #tpu.memory_space<vmem>>, vector<1x1x128xf32>,
    return
  }
  func.func @transform_0(%arg0: i32, %arg1: i32, %arg2: i32) -> (i32, i32) {
    %c0_i32 = arith.constant 0 : i32
    return %arg0, %arg2 : i32, i32
  }
  func.func @transform_1(%arg0: i32, %arg1: i32, %arg2: i32) -> (i32, i32) {
    %c0_i32 = arith.constant 0 : i32
    return %arg2, %arg1 : i32, i32
  }
  func.func @transform_2(%arg0: i32, %arg1: i32, %arg2: i32) -> (i32, i32) {
    %c0_i32 = arith.constant 0 : i32
    return %arg0, %arg1 : i32, i32
  }
  func.func @transform_3(%arg0: i32, %arg1: i32, %arg2: i32) -> (i32, i32, i32) {
    %c0_i32 = arith.constant 0 : i32
    %c0_i32_0 = arith.constant 0 : i32
    return %arg0, %c0_i32, %arg1 : i32, i32, i32
  }
  func.func @transform_4(%arg0: i32, %arg1: i32, %arg2: i32) -> (i32, i32, i32) {
    %c0_i32 = arith.constant 0 : i32
    %c0_i32_0 = arith.constant 0 : i32
    return %arg0, %c0_i32, %arg1 : i32, i32, i32
  }
}

</mosaic_0001>

<llo_original>
// kernel: tpu_custom_call.1
$region0: #{tpu_custom_call.1}
  #allocation0 [shape = 'u32[]', space=smem, size = 0x4, offset = 0x4, fixed_abs, tag = 'smem constant byte address 0x4 - core index']
  #allocation1 [shape = 'u32[72,128]{1,0:T(1,128)}', space=vmem, size = 0x9000, scoped, tag = 'internal scratch']
  %s0 = inlined_call_operand.vmem [shape: bf16[512,36], index: 0, kind: input, shape index: {}]
  %s1 = inlined_call_operand.vmem [shape: bf16[36,128], index: 1, kind: input, shape index: {}]
  %s2 = inlined_call_operand.hbm [shape: bf16[512,128], index: 2, kind: output, shape index: {0}]
  %s3 = inlined_call_operand.hbm [shape: f32[2,1,128], index: 3, kind: output, shape index: {1}]
  %s4 = inlined_call_operand.hbm [shape: f32[2,1,128], index: 4, kind: output, shape index: {2}]
  %5 = xla_tuple %s2, %s3, %s4
  %s6 = sld [smem:[#allocation0]]
  $region57: #{tpu_custom_call.1} parent=0
    _
  %s8 = ssub.s32 1, %s6
  %s9 = scalar_select 0, %s8, %s6
  $region1: #{tpu_custom_call.1} parent=0
    #allocation2 [shape = 'u8[131072]{0}', space=vmem, size = 0x20000, scoped, tag = 'output window, operand 0']
    #allocation3 [shape = 's32[2]{0}', space=sflag, size = 0x8, scoped, tag = 'scoped memory for tpu_custom_call.1']
    #allocation4 [shape = 'u8[1024]{0}', space=vmem, size = 0x400, scoped, tag = 'output window, operand 1']
    #allocation5 [shape = 's32[2]{0}', space=sflag, size = 0x8, scoped, tag = 'scoped memory for tpu_custom_call.1']
    #allocation6 [shape = 'u8[1024]{0}', space=vmem, size = 0x400, scoped, tag = 'output window, operand 2']
    %10 = vsyncpa [#allocation3], 0
    %s11 = scalar_lea.sflag [#allocation3], 1
    %12 = vsyncpa %s11, 0
    %13 = vsyncpa [#allocation5], 0
    %s14 = scalar_lea.sflag [#allocation5], 1
    %15 = vsyncpa %s14, 0
    loop: start=0, step=1, limit=4
    $region2: #{tpu_custom_call.1} parent=1 // loop_pre_header
      _
    $region3: #{tpu_custom_call.1} parent=1 // loop_header
      %s17 = sphi 0, %s21
      %p18 = scmp.ge.s32.totalorder %s17, 4
      %s24 = sphi 0, %s43
      %s25 = sphi 0, %s39
      %s26 = sphi 0, %s35
      %s27 = sphi 0, %s24
      %s28 = sphi 0, %s25
      %s29 = sphi 0, %s26
      %s30 = sphi 0, %s27
      %s31 = sphi 0, %s28
      %s32 = sphi 0, %s29
      %s48 = sphi 0, %s50
      %s51 = sphi 0, %s48
      %s52 = sphi 0, %s51
      %s68 = sphi 0, %s52
      %s76 = sphi 0, %s78
      %s79 = sphi 0, %s76
      %s80 = sphi 0, %s79
      %s96 = sphi 0, %s80
      %s104 = sphi 0, %s106
      %s107 = sphi 0, %s104
      %s108 = sphi 0, %s107
      %s124 = sphi 0, %s108
      %s132 = sphi 0, %s134
      %s135 = sphi 0, %s132
      %s136 = sphi 0, %s135
      %s152 = sphi 0, %s136
      %s160 = sphi 0, %s162
      %s163 = sphi 0, %s160
      %s164 = sphi 0, %s163
      %s180 = sphi 0, %s164
    $region4: #{tpu_custom_call.1} parent=1 // loop_header_branch
      %20 = sbr.rel (%p18) target = $region8
    $region5: #{tpu_custom_call.1} parent=1 // loop_body
      %s22 = ssub.s32 %s17, 1
      %s23 = ssub.s32 %s17, 2
      %s33 = sadd.s32 1, %s26
      %p34 = scmp.ge.s32.totalorder %s33, 1
      %s35 = scalar_select %p34, 0, %s33
      %s36 = sadd.s32 1, %s25
      %s37 = scalar_select %p34, %s36, %s25
      %p38 = scmp.ge.s32.totalorder %s37, 1
      %s39 = scalar_select %p38, 0, %s37
      %s40 = sadd.s32 1, %s24
      %s41 = scalar_select %p38, %s40, %s24
      %p42 = scmp.ge.s32.totalorder %s41, 2
      %s43 = scalar_select %p42, 0, %s41
      %s44 = ssub.s32 %s24, %s43
      %s45 = ssub.s32 %s26, %s35
      %s46 = sor.u32 %s44, %s45
      %p47 = scmp.eq.s32.totalorder %s46, 0
      %s49 = sadd.s32 %s48, 1
      %s50 = scalar_select %p47, %s48, %s49
      %p53 = pneg %p47
      %p54 = scmp.eq.s32.totalorder %s17, 1
      %p55 = por %p53, %p54
      %p56 = scmp.ne.s32.totalorder %s48, %s51
      %p57 = scmp.eq.s32.totalorder %s17, 0
      %p58 = por %p56, %p57
      %p59 = scmp.ne.s32.totalorder %s48, %s51
      %p60 = scmp.eq.s32.totalorder %s22, 1
      %p61 = por %p59, %p60
      %p62 = scmp.ne.s32.totalorder %s51, %s52
      %p63 = scmp.eq.s32.totalorder %s22, 0
      %p64 = por %p62, %p63
      %p65 = scmp.ne.s32.totalorder %s51, %s52
      %p66 = scmp.eq.s32.totalorder %s23, 1
      %p67 = por %p65, %p66
      %p69 = scmp.ne.s32.totalorder %s52, %s68
      %p70 = scmp.eq.s32.totalorder %s23, 0
      %p71 = por %p69, %p70
      %s72 = ssub.s32 %s26, %s35
      %s73 = ssub.s32 %s25, %s39
      %s74 = sor.u32 %s72, %s73
      %p75 = scmp.eq.s32.totalorder %s74, 0
      %s77 = sadd.s32 %s76, 1
      %s78 = scalar_select %p75, %s76, %s77
      %p81 = pneg %p75
      %p82 = scmp.eq.s32.totalorder %s17, 1
      %p83 = por %p81, %p82
      %p84 = scmp.ne.s32.totalorder %s76, %s79
      %p85 = scmp.eq.s32.totalorder %s17, 0
      %p86 = por %p84, %p85
      %p87 = scmp.ne.s32.totalorder %s76, %s79
      %p88 = scmp.eq.s32.totalorder %s22, 1
      %p89 = por %p87, %p88
      %p90 = scmp.ne.s32.totalorder %s79, %s80
      %p91 = scmp.eq.s32.totalorder %s22, 0
      %p92 = por %p90, %p91
      %p93 = scmp.ne.s32.totalorder %s79, %s80
      %p94 = scmp.eq.s32.totalorder %s23, 1
      %p95 = por %p93, %p94
      %p97 = scmp.ne.s32.totalorder %s80, %s96
      %p98 = scmp.eq.s32.totalorder %s23, 0
      %p99 = por %p97, %p98
      %s100 = ssub.s32 %s24, %s43
      %s101 = ssub.s32 %s25, %s39
      %s102 = sor.u32 %s100, %s101
      %p103 = scmp.eq.s32.totalorder %s102, 0
      %s105 = sadd.s32 %s104, 1
      %s106 = scalar_select %p103, %s104, %s105
      %p109 = pneg %p103
      %p110 = scmp.eq.s32.totalorder %s17, 1
      %p111 = por %p109, %p110
      %p112 = scmp.ne.s32.totalorder %s104, %s107
      %p113 = scmp.eq.s32.totalorder %s17, 0
      %p114 = por %p112, %p113
      %p115 = scmp.ne.s32.totalorder %s104, %s107
      %p116 = scmp.eq.s32.totalorder %s22, 1
      %p117 = por %p115, %p116
      %p118 = scmp.ne.s32.totalorder %s107, %s108
      %p119 = scmp.eq.s32.totalorder %s22, 0
      %p120 = por %p118, %p119
      %p121 = scmp.ne.s32.totalorder %s107, %s108
      %p122 = scmp.eq.s32.totalorder %s23, 1
      %p123 = por %p121, %p122
      %p125 = scmp.ne.s32.totalorder %s108, %s124
      %p126 = scmp.eq.s32.totalorder %s23, 0
      %p127 = por %p125, %p126
      %s128 = ssub.s32 %s24, %s43
      %s129 = ssub.s32 %s25, %s39
      %s130 = sor.u32 %s128, %s129
      %p131 = scmp.eq.s32.totalorder %s130, 0
      %s133 = sadd.s32 %s132, 1
      %s134 = scalar_select %p131, %s132, %s133
      %p137 = pneg %p131
      %p138 = scmp.eq.s32.totalorder %s17, 1
      %p139 = por %p137, %p138
      %p140 = scmp.ne.s32.totalorder %s132, %s135
      %p141 = scmp.eq.s32.totalorder %s17, 0
      %p142 = por %p140, %p141
      %p143 = scmp.ne.s32.totalorder %s132, %s135
      %p144 = scmp.eq.s32.totalorder %s22, 1
      %p145 = por %p143, %p144
      %p146 = scmp.ne.s32.totalorder %s135, %s136
      %p147 = scmp.eq.s32.totalorder %s22, 0
      %p148 = por %p146, %p147
      %p149 = scmp.ne.s32.totalorder %s135, %s136
      %p150 = scmp.eq.s32.totalorder %s23, 1
      %p151 = por %p149, %p150
      %p153 = scmp.ne.s32.totalorder %s136, %s152
      %p154 = scmp.eq.s32.totalorder %s23, 0
      %p155 = por %p153, %p154
      %s156 = ssub.s32 %s24, %s43
      %s157 = ssub.s32 %s25, %s39
      %s158 = sor.u32 %s156, %s157
      %p159 = scmp.eq.s32.totalorder %s158, 0
      %s161 = sadd.s32 %s160, 1
      %s162 = scalar_select %p159, %s160, %s161
      %p165 = pneg %p159
      %p166 = scmp.eq.s32.totalorder %s17, 1
      %p167 = por %p165, %p166
      %p168 = scmp.ne.s32.totalorder %s160, %s163
      %p169 = scmp.eq.s32.totalorder %s17, 0
      %p170 = por %p168, %p169
      %p171 = scmp.ne.s32.totalorder %s160, %s163
      %p172 = scmp.eq.s32.totalorder %s22, 1
      %p173 = por %p171, %p172
      %p174 = scmp.ne.s32.totalorder %s163, %s164
      %p175 = scmp.eq.s32.totalorder %s22, 0
      %p176 = por %p174, %p175
      %p177 = scmp.ne.s32.totalorder %s163, %s164
      %p178 = scmp.eq.s32.totalorder %s23, 1
      %p179 = por %p177, %p178
      %p181 = scmp.ne.s32.totalorder %s164, %s180
      %p182 = scmp.eq.s32.totalorder %s23, 0
      %p183 = por %p181, %p182
      %p184 = scmp.le.s32.totalorder 1, %s17
      %p185 = scmp.lt.s32.totalorder %s17, 3
      %p186 = pnand %p184, %p185
      %p187 = pneg %p186
      // Predicated region
      $region9: #{tpu_custom_call.1} parent=5 // pred_check
        _
      $region10: #{tpu_custom_call.1} parent=5 // pred_check_branch
        %189 = sbr.rel (%p186) target = $region12
      $region11: #{tpu_custom_call.1} parent=5 // pred_region
        %s190 = ssub.s32 %s17, 1
        // Predicated region
        $region13: #{tpu_custom_call.1} parent=11 // pred_check
          %p191 = pneg %p92
        $region14: #{tpu_custom_call.1} parent=11 // pred_check_branch
          %193 = sbr.rel (%p191) target = $region16
        $region15: #{tpu_custom_call.1} parent=11 // pred_region
          %s194 = smul.u32 5, %s29
          %p195 = scmp.lt.s32.totalorder %s194, 4
          %s196 = scalar_select %p195, %s194, 4
          %p197 = scmp.lt.s32.totalorder %s28, 0
          %s198 = scalar_select %p197, %s28, 0
          %s199 = sadd.s32 %s198, %s196
          %s200 = smul.addr %s199, 4
          %s201 = scalar_lea.vmem %s1, %s200
          %s202 = smul.u32 5, %s29
        $region16: #{tpu_custom_call.1} parent=11 // pred_fallthru
          _
      $region12: #{tpu_custom_call.1} parent=5 // pred_fallthru
        _
      %p203 = scmp.lt.s32.totalorder %s17, 2
      // Predicated region
      $region17: #{tpu_custom_call.1} parent=5 // pred_check
        %p204 = pneg %p203
      $region18: #{tpu_custom_call.1} parent=5 // pred_check_branch
        %206 = sbr.rel (%p204) target = $region20
      $region19: #{tpu_custom_call.1} parent=5 // pred_region
        // Predicated region
        $region21: #{tpu_custom_call.1} parent=19 // pred_check
          %p207 = pneg %p58
        $region22: #{tpu_custom_call.1} parent=19 // pred_check_branch
          %209 = sbr.rel (%p207) target = $region24
        $region23: #{tpu_custom_call.1} parent=19 // pred_region
          %s210 = smul.u32 32, %s24
          %p211 = scmp.lt.s32.totalorder %s210, 63
          %s212 = scalar_select %p211, %s210, 63
          %p213 = scmp.lt.s32.totalorder %s26, 0
          %s214 = scalar_select %p213, %s26, 0
          %s215 = sadd.s32 %s214, %s212
          %s216 = smul.addr %s215, 4
          %s217 = scalar_lea.vmem %s0, %s216
          %s218 = smul.u32 32, %s24
        $region24: #{tpu_custom_call.1} parent=19 // pred_fallthru
          _
      $region20: #{tpu_custom_call.1} parent=5 // pred_fallthru
        _
      %p219 = scmp.le.s32.totalorder 1, %s17
      %p220 = scmp.lt.s32.totalorder %s17, 3
      %p221 = pnand %p219, %p220
      %p222 = pneg %p221
      // Predicated region
      $region25: #{tpu_custom_call.1} parent=5 // pred_check
        _
      $region26: #{tpu_custom_call.1} parent=5 // pred_check_branch
        %224 = sbr.rel (%p221) target = $region28
      $region27: #{tpu_custom_call.1} parent=5 // pred_region
        %s225 = ssub.s32 %s17, 1
        %s226 = smul.u32 32, %s27
        %p227 = scmp.lt.s32.totalorder %s226, 63
        %s228 = scalar_select %p227, %s226, 63
        %p229 = scmp.lt.s32.totalorder %s29, 0
        %s230 = scalar_select %p229, %s29, 0
        %s231 = sadd.s32 %s230, %s228
        %s232 = smul.addr %s231, 4
        %s233 = scalar_lea.vmem %s0, %s232
        %p234 = pneg %p64
        %p235 = pneg %p61
        %s236 = smul.u32 5, %s29
        %p237 = scmp.lt.s32.totalorder %s236, 4
        %s238 = scalar_select %p237, %s236, 4
        %p239 = scmp.lt.s32.totalorder %s28, 0
        %s240 = scalar_select %p239, %s28, 0
        %s241 = sadd.s32 %s240, %s238
        %s242 = smul.addr %s241, 4
        %s243 = scalar_lea.vmem %s1, %s242
        %p244 = pneg %p92
        %p245 = pneg %p89
        %p246 = pneg %p120
        %p247 = pneg %p117
        %s248 = sand.u32 %s107, 1
        %s249 = scalar_lea.sflag [#allocation3], %s248
        %s250 = sand.u32 %s107, 1
        %s251 = smul.addr %s250, 128
        %s252 = scalar_lea.vmem [#allocation2], %s251
        %p253 = pneg %p148
        %p254 = pneg %p145
        %s255 = sand.u32 %s22, 1
        %s256 = scalar_lea.sflag [#allocation5], %s255
        %s257 = sand.u32 %s135, 1
        %s258 = scalar_lea.vmem [#allocation4], %s257
        %p259 = pneg %p176
        %p260 = pneg %p173
        %s261 = sand.u32 %s22, 1
        %s262 = scalar_lea.sflag [#allocation5], %s261
        %s263 = sand.u32 %s163, 1
        %s264 = scalar_lea.vmem [#allocation6], %s263
        %s265 = smul.u32 32, %s27
        %p266 = scmp.lt.s32.totalorder %s265, 63
        %s267 = scalar_select %p266, %s265, 63
        %p268 = scmp.lt.s32.totalorder %s29, 0
        %s269 = scalar_select %p268, %s29, 0
        %s270 = sadd.s32 %s269, %s267
        %s271 = smul.addr %s270, 4
        %s272 = scalar_lea.vmem %s0, %s271
        %s273 = smul.u32 32, %s27
        %s274 = smul.u32 5, %s29
        %p275 = scmp.lt.s32.totalorder %s274, 4
        %s276 = scalar_select %p275, %s274, 4
        %p277 = scmp.lt.s32.totalorder %s28, 0
        %s278 = scalar_select %p277, %s28, 0
        %s279 = sadd.s32 %s278, %s276
        %s280 = smul.addr %s279, 4
        %s281 = scalar_lea.vmem %s1, %s280
        %s282 = smul.u32 5, %s29
        %s283 = smul.u32 32, %s27
        %v285 = vld [vmem:[%s272] sm:$0xf]
        %v286 = vld [vmem:[%s272 + $0x4] sm:$0xf]
        %v287 = vld [vmem:[%s272 + $0x8] sm:$0xf]
        %v288 = vld [vmem:[%s272 + $0xc] sm:$0xf]
        %v289 = vld [vmem:[%s272 + $0x10] sm:$0xf]
        %v290 = vld [vmem:[%s272 + $0x14] sm:$0xf]
        %v291 = vld [vmem:[%s272 + $0x18] sm:$0xf]
        %v292 = vld [vmem:[%s272 + $0x1c] sm:$0xf]
        %v293 = vld [vmem:[%s272 + $0x20] sm:$0xf]
        %v294 = vld [vmem:[%s272 + $0x24] sm:$0xf]
        %v295 = vld [vmem:[%s272 + $0x28] sm:$0xf]
        %v296 = vld [vmem:[%s272 + $0x2c] sm:$0xf]
        %v297 = vld [vmem:[%s272 + $0x30] sm:$0xf]
        %v298 = vld [vmem:[%s272 + $0x34] sm:$0xf]
        %v299 = vld [vmem:[%s272 + $0x38] sm:$0xf]
        %v300 = vld [vmem:[%s272 + $0x3c] sm:$0xf]
        %v301 = vld [vmem:[%s272 + $0x40] sm:$0xf]
        %v302 = vld [vmem:[%s272 + $0x44] sm:$0xf]
        %v303 = vld [vmem:[%s272 + $0x48] sm:$0xf]
        %v304 = vld [vmem:[%s272 + $0x4c] sm:$0xf]
        %v305 = vld [vmem:[%s272 + $0x50] sm:$0xf]
        %v306 = vld [vmem:[%s272 + $0x54] sm:$0xf]
        %v307 = vld [vmem:[%s272 + $0x58] sm:$0xf]
        %v308 = vld [vmem:[%s272 + $0x5c] sm:$0xf]
        %v309 = vld [vmem:[%s272 + $0x60] sm:$0xf]
        %v310 = vld [vmem:[%s272 + $0x64] sm:$0xf]
        %v311 = vld [vmem:[%s272 + $0x68] sm:$0xf]
        %v312 = vld [vmem:[%s272 + $0x6c] sm:$0xf]
        %v313 = vld [vmem:[%s272 + $0x70] sm:$0xf]
        %v314 = vld [vmem:[%s272 + $0x74] sm:$0xf]
        %v315 = vld [vmem:[%s272 + $0x78] sm:$0xf]
        %v316 = vld [vmem:[%s272 + $0x7c] sm:$0xf]
        %v317 = vld [vmem:[%s281] sm:$0xf]
        %v318 = vld [vmem:[%s281 + $0x4] sm:$0xf]
        %v319 = vld [vmem:[%s281 + $0x8] sm:$0xf]
        %v320 = vld [vmem:[%s281 + $0xc] sm:$0xf]
        %v321 = vld [vmem:[%s281 + $0x10] sm:$0x3]
        %v354 = vunpack.c.l.b16 %v285
        %v355 = vunpack.c.l.b16 %v286
        %v356 = vunpack.c.l.b16 %v287
        %v357 = vunpack.c.l.b16 %v288
        %v358 = vunpack.c.l.b16 %v289
        %v359 = vunpack.c.l.b16 %v290
        %v360 = vunpack.c.l.b16 %v291
        %v361 = vunpack.c.l.b16 %v292
        %v362 = vunpack.c.l.b16 %v293
        %v363 = vunpack.c.l.b16 %v294
        %v364 = vunpack.c.l.b16 %v295
        %v365 = vunpack.c.l.b16 %v296
        %v366 = vunpack.c.l.b16 %v297
        %v367 = vunpack.c.l.b16 %v298
        %v368 = vunpack.c.l.b16 %v299
        %v369 = vunpack.c.l.b16 %v300
        %v370 = vunpack.c.l.b16 %v301
        %v371 = vunpack.c.l.b16 %v302
        %v372 = vunpack.c.l.b16 %v303
        %v373 = vunpack.c.l.b16 %v304
        %v374 = vunpack.c.l.b16 %v305
        %v375 = vunpack.c.l.b16 %v306
        %v376 = vunpack.c.l.b16 %v307
        %v377 = vunpack.c.l.b16 %v308
        %v378 = vunpack.c.l.b16 %v309
        %v379 = vunpack.c.l.b16 %v310
        %v380 = vunpack.c.l.b16 %v311
        %v381 = vunpack.c.l.b16 %v312
        %v382 = vunpack.c.l.b16 %v313
        %v383 = vunpack.c.l.b16 %v314
        %v384 = vunpack.c.l.b16 %v315
        %v385 = vunpack.c.l.b16 %v316
        %v386 = vpack.c.b16 %v355, %v354
        %v387 = vpack.c.b16 %v357, %v356
        %v388 = vpack.c.b16 %v359, %v358
        %v389 = vpack.c.b16 %v361, %v360
        %v390 = vpack.c.b16 %v363, %v362
        %v391 = vpack.c.b16 %v365, %v364
        %v392 = vpack.c.b16 %v367, %v366
        %v393 = vpack.c.b16 %v369, %v368
        %v394 = vpack.c.b16 %v371, %v370
        %v395 = vpack.c.b16 %v373, %v372
        %v396 = vpack.c.b16 %v375, %v374
        %v397 = vpack.c.b16 %v377, %v376
        %v398 = vpack.c.b16 %v379, %v378
        %v399 = vpack.c.b16 %v381, %v380
        %v400 = vpack.c.b16 %v383, %v382
        %v401 = vpack.c.b16 %v385, %v384
        %v407 = vunpack.c.l.b16 %v317
        %v408 = vunpack.c.l.b16 %v318
        %v409 = vunpack.c.l.b16 %v319
        %v410 = vunpack.c.l.b16 %v320
        %v411 = vunpack.c.l.b16 %v321
        %v412 = vpack.c.b16 %v408, %v407
        %v413 = vpack.c.b16 %v410, %v409
        %v414 = vpack.c.b16 %v411, %v411
        %vm417 = vcmask 293888
        %v419 = vsel %vm417, %v386, 0
        %v422 = vsel %vm417, %v387, 0
        %v425 = vsel %vm417, %v388, 0
        %v428 = vsel %vm417, %v389, 0
        %v431 = vsel %vm417, %v390, 0
        %v434 = vsel %vm417, %v391, 0
        %v437 = vsel %vm417, %v392, 0
        %v440 = vsel %vm417, %v393, 0
        %v443 = vsel %vm417, %v394, 0
        %v446 = vsel %vm417, %v395, 0
        %v449 = vsel %vm417, %v396, 0
        %v452 = vsel %vm417, %v397, 0
        %v455 = vsel %vm417, %v398, 0
        %v458 = vsel %vm417, %v399, 0
        %v461 = vsel %vm417, %v400, 0
        %v464 = vsel %vm417, %v401, 0
        %vm466 = vcmask 1041408
        %v468 = vsel %vm466, %v414, 0
        %470 = vmatpush.bf16.msra.mxu0 0
        %471 = vmatpush.bf16.msra.mxu0 0
        %472 = vmatpush.bf16.msra.mxu0 0
        %473 = vmatpush.bf16.msra.mxu0 0
        %474 = vmatpush.bf16.msra.mxu0 0
        %475 = vmatpush.bf16.msra.mxu0 %v468
        %476 = vmatpush.bf16.msra.mxu0 %v413
        %477 = vmatpush.bf16.msra.mxu0 %v412
        %478 = vmatmul.bf16.gmra.mxu0 %v419
        %v479 = vpop.f32.mrf.mxu0
        %v480 = vadd.f32 0.0, %v479
        %v481 = vpop.f32.mrf.mxu0
        %v482 = vadd.f32 0.0, %v481
        %483 = vmatmul.bf16.gmra.mxu0 %v422
        %v484 = vpop.f32.mrf.mxu0
        %v485 = vadd.f32 0.0, %v484
        %v486 = vpop.f32.mrf.mxu0
        %v487 = vadd.f32 0.0, %v486
        %488 = vmatmul.bf16.gmra.mxu0 %v425
        %v489 = vpop.f32.mrf.mxu0
        %v490 = vadd.f32 0.0, %v489
        %v491 = vpop.f32.mrf.mxu0
        %v492 = vadd.f32 0.0, %v491
        %493 = vmatmul.bf16.gmra.mxu0 %v428
        %v494 = vpop.f32.mrf.mxu0
        %v495 = vadd.f32 0.0, %v494
        %v496 = vpop.f32.mrf.mxu0
        %v497 = vadd.f32 0.0, %v496
        %498 = vmatmul.bf16.gmra.mxu0 %v431
        %v499 = vpop.f32.mrf.mxu0
        %v500 = vadd.f32 0.0, %v499
        %v501 = vpop.f32.mrf.mxu0
        %v502 = vadd.f32 0.0, %v501
        %503 = vmatmul.bf16.gmra.mxu0 %v434
        %v504 = vpop.f32.mrf.mxu0
        %v505 = vadd.f32 0.0, %v504
        %v506 = vpop.f32.mrf.mxu0
        %v507 = vadd.f32 0.0, %v506
        %508 = vmatmul.bf16.gmra.mxu0 %v437
        %v509 = vpop.f32.mrf.mxu0
        %v510 = vadd.f32 0.0, %v509
        %v511 = vpop.f32.mrf.mxu0
        %v512 = vadd.f32 0.0, %v511
        %513 = vmatmul.bf16.gmra.mxu0 %v440
        %v514 = vpop.f32.mrf.mxu0
        %v515 = vadd.f32 0.0, %v514
        %v516 = vpop.f32.mrf.mxu0
        %v517 = vadd.f32 0.0, %v516
        %518 = vmatmul.bf16.gmra.mxu0 %v443
        %v519 = vpop.f32.mrf.mxu0
        %v520 = vadd.f32 0.0, %v519
        %v521 = vpop.f32.mrf.mxu0
        %v522 = vadd.f32 0.0, %v521
        %523 = vmatmul.bf16.gmra.mxu0 %v446
        %v524 = vpop.f32.mrf.mxu0
        %v525 = vadd.f32 0.0, %v524
        %v526 = vpop.f32.mrf.mxu0
        %v527 = vadd.f32 0.0, %v526
        %528 = vmatmul.bf16.gmra.mxu0 %v449
        %v529 = vpop.f32.mrf.mxu0
        %v530 = vadd.f32 0.0, %v529
        %v531 = vpop.f32.mrf.mxu0
        %v532 = vadd.f32 0.0, %v531
        %533 = vmatmul.bf16.gmra.mxu0 %v452
        %v534 = vpop.f32.mrf.mxu0
        %v535 = vadd.f32 0.0, %v534
        %v536 = vpop.f32.mrf.mxu0
        %v537 = vadd.f32 0.0, %v536
        %538 = vmatmul.bf16.gmra.mxu0 %v455
        %v539 = vpop.f32.mrf.mxu0
        %v540 = vadd.f32 0.0, %v539
        %v541 = vpop.f32.mrf.mxu0
        %v542 = vadd.f32 0.0, %v541
        %543 = vmatmul.bf16.gmra.mxu0 %v458
        %v544 = vpop.f32.mrf.mxu0
        %v545 = vadd.f32 0.0, %v544
        %v546 = vpop.f32.mrf.mxu0
        %v547 = vadd.f32 0.0, %v546
        %548 = vmatmul.bf16.gmra.mxu0 %v461
        %v549 = vpop.f32.mrf.mxu0
        %v550 = vadd.f32 0.0, %v549
        %v551 = vpop.f32.mrf.mxu0
        %v552 = vadd.f32 0.0, %v551
        %553 = vmatmul.bf16.gmra.mxu0 %v464
        %v554 = vpop.f32.mrf.mxu0
        %v555 = vadd.f32 0.0, %v554
        %v556 = vpop.f32.mrf.mxu0
        %v557 = vadd.f32 0.0, %v556
        %558 = vdwg.mxu0
        %v559 = vpack.c.bf16 %v480, %v480
        %v560 = vpack.c.bf16 %v482, %v482
        %v561 = vpack.c.bf16 %v485, %v485
        %v562 = vpack.c.bf16 %v487, %v487
        %v563 = vpack.c.bf16 %v490, %v490
        %v564 = vpack.c.bf16 %v492, %v492
        %v565 = vpack.c.bf16 %v495, %v495
        %v566 = vpack.c.bf16 %v497, %v497
        %v567 = vpack.c.bf16 %v500, %v500
        %v568 = vpack.c.bf16 %v502, %v502
        %v569 = vpack.c.bf16 %v505, %v505
        %v570 = vpack.c.bf16 %v507, %v507
        %v571 = vpack.c.bf16 %v510, %v510
        %v572 = vpack.c.bf16 %v512, %v512
        %v573 = vpack.c.bf16 %v515, %v515
        %v574 = vpack.c.bf16 %v517, %v517
        %v575 = vpack.c.bf16 %v520, %v520
        %v576 = vpack.c.bf16 %v522, %v522
        %v577 = vpack.c.bf16 %v525, %v525
        %v578 = vpack.c.bf16 %v527, %v527
        %v579 = vpack.c.bf16 %v530, %v530
        %v580 = vpack.c.bf16 %v532, %v532
        %v581 = vpack.c.bf16 %v535, %v535
        %v582 = vpack.c.bf16 %v537, %v537
        %v583 = vpack.c.bf16 %v540, %v540
        %v584 = vpack.c.bf16 %v542, %v542
        %v585 = vpack.c.bf16 %v545, %v545
        %v586 = vpack.c.bf16 %v547, %v547
        %v587 = vpack.c.bf16 %v550, %v550
        %v588 = vpack.c.bf16 %v552, %v552
        %v589 = vpack.c.bf16 %v555, %v555
        %v590 = vpack.c.bf16 %v557, %v557
        %591 = vst [vmem:[%s252] sm:$0xf] %v559
        %592 = vst [vmem:[%s252 + $0x4] sm:$0xf] %v560
        %593 = vst [vmem:[%s252 + $0x8] sm:$0xf] %v561
        %594 = vst [vmem:[%s252 + $0xc] sm:$0xf] %v562
        %595 = vst [vmem:[%s252 + $0x10] sm:$0xf] %v563
        %596 = vst [vmem:[%s252 + $0x14] sm:$0xf] %v564
        %597 = vst [vmem:[%s252 + $0x18] sm:$0xf] %v565
        %598 = vst [vmem:[%s252 + $0x1c] sm:$0xf] %v566
        %599 = vst [vmem:[%s252 + $0x20] sm:$0xf] %v567
        %600 = vst [vmem:[%s252 + $0x24] sm:$0xf] %v568
        %601 = vst [vmem:[%s252 + $0x28] sm:$0xf] %v569
        %602 = vst [vmem:[%s252 + $0x2c] sm:$0xf] %v570
        %603 = vst [vmem:[%s252 + $0x30] sm:$0xf] %v571
        %604 = vst [vmem:[%s252 + $0x34] sm:$0xf] %v572
        %605 = vst [vmem:[%s252 + $0x38] sm:$0xf] %v573
        %606 = vst [vmem:[%s252 + $0x3c] sm:$0xf] %v574
        %607 = vst [vmem:[%s252 + $0x40] sm:$0xf] %v575
        %608 = vst [vmem:[%s252 + $0x44] sm:$0xf] %v576
        %609 = vst [vmem:[%s252 + $0x48] sm:$0xf] %v577
        %610 = vst [vmem:[%s252 + $0x4c] sm:$0xf] %v578
        %611 = vst [vmem:[%s252 + $0x50] sm:$0xf] %v579
        %612 = vst [vmem:[%s252 + $0x54] sm:$0xf] %v580
        %613 = vst [vmem:[%s252 + $0x58] sm:$0xf] %v581
        %614 = vst [vmem:[%s252 + $0x5c] sm:$0xf] %v582
        %615 = vst [vmem:[%s252 + $0x60] sm:$0xf] %v583
        %616 = vst [vmem:[%s252 + $0x64] sm:$0xf] %v584
        %617 = vst [vmem:[%s252 + $0x68] sm:$0xf] %v585
        %618 = vst [vmem:[%s252 + $0x6c] sm:$0xf] %v586
        %619 = vst [vmem:[%s252 + $0x70] sm:$0xf] %v587
        %620 = vst [vmem:[%s252 + $0x74] sm:$0xf] %v588
        %621 = vst [vmem:[%s252 + $0x78] sm:$0xf] %v589
        %622 = vst [vmem:[%s252 + $0x7c] sm:$0xf] %v590
        %s623 = smul.u32 %s27, 256
        %v624 = vlaneseq
        %v625 = vshrl.u32 %v624, 7
        %v626 = vadd.s32 %v625, 8
        %v627 = vadd.s32 %v625, 16
        %v628 = vadd.s32 %v625, 24
        %v629 = vadd.s32 %v625, 32
        %v630 = vadd.s32 %v625, 40
        %v631 = vadd.s32 %v625, 48
        %v632 = vadd.s32 %v625, 56
        %v633 = vadd.s32 %v625, 64
        %v634 = vadd.s32 %v625, 72
        %v635 = vadd.s32 %v625, 80
        %v636 = vadd.s32 %v625, 88
        %v637 = vadd.s32 %v625, 96
        %v638 = vadd.s32 %v625, 104
        %v639 = vadd.s32 %v625, 112
        %v640 = vadd.s32 %v625, 120
        %v641 = vadd.s32 %v625, 128
        %v642 = vadd.s32 %v625, 136
        %v643 = vadd.s32 %v625, 144
        %v644 = vadd.s32 %v625, 152
        %v645 = vadd.s32 %v625, 160
        %v646 = vadd.s32 %v625, 168
        %v647 = vadd.s32 %v625, 176
        %v648 = vadd.s32 %v625, 184
        %v649 = vadd.s32 %v625, 192
        %v650 = vadd.s32 %v625, 200
        %v651 = vadd.s32 %v625, 208
        %v652 = vadd.s32 %v625, 216
        %v653 = vadd.s32 %v625, 224
        %v654 = vadd.s32 %v625, 232
        %v655 = vadd.s32 %v625, 240
        %v656 = vadd.s32 %v625, 248
        %v657 = vstv %s623
        %v658 = vadd.s32 %v657, %v625
        %v659 = vadd.s32 %v657, %v626
        %v660 = vadd.s32 %v657, %v627
        %v661 = vadd.s32 %v657, %v628
        %v662 = vadd.s32 %v657, %v629
        %v663 = vadd.s32 %v657, %v630
        %v664 = vadd.s32 %v657, %v631
        %v665 = vadd.s32 %v657, %v632
        %v666 = vadd.s32 %v657, %v633
        %v667 = vadd.s32 %v657, %v634
        %v668 = vadd.s32 %v657, %v635
        %v669 = vadd.s32 %v657, %v636
        %v670 = vadd.s32 %v657, %v637
        %v671 = vadd.s32 %v657, %v638
        %v672 = vadd.s32 %v657, %v639
        %v673 = vadd.s32 %v657, %v640
        %v674 = vadd.s32 %v657, %v641
        %v675 = vadd.s32 %v657, %v642
        %v676 = vadd.s32 %v657, %v643
        %v677 = vadd.s32 %v657, %v644
        %v678 = vadd.s32 %v657, %v645
        %v679 = vadd.s32 %v657, %v646
        %v680 = vadd.s32 %v657, %v647
        %v681 = vadd.s32 %v657, %v648
        %v682 = vadd.s32 %v657, %v649
        %v683 = vadd.s32 %v657, %v650
        %v684 = vadd.s32 %v657, %v651
        %v685 = vadd.s32 %v657, %v652
        %v686 = vadd.s32 %v657, %v653
        %v687 = vadd.s32 %v657, %v654
        %v688 = vadd.s32 %v657, %v655
        %v689 = vadd.s32 %v657, %v656
        %vm690 = vcmp.lt.s32.totalorder %v658, 512
        %vm691 = vcmp.lt.s32.totalorder %v659, 512
        %vm692 = vcmp.lt.s32.totalorder %v660, 512
        %vm693 = vcmp.lt.s32.totalorder %v661, 512
        %vm694 = vcmp.lt.s32.totalorder %v662, 512
        %vm695 = vcmp.lt.s32.totalorder %v663, 512
        %vm696 = vcmp.lt.s32.totalorder %v664, 512
        %vm697 = vcmp.lt.s32.totalorder %v665, 512
        %vm698 = vcmp.lt.s32.totalorder %v666, 512
        %vm699 = vcmp.lt.s32.totalorder %v667, 512
        %vm700 = vcmp.lt.s32.totalorder %v668, 512
        %vm701 = vcmp.lt.s32.totalorder %v669, 512
        %vm702 = vcmp.lt.s32.totalorder %v670, 512
        %vm703 = vcmp.lt.s32.totalorder %v671, 512
        %vm704 = vcmp.lt.s32.totalorder %v672, 512
        %vm705 = vcmp.lt.s32.totalorder %v673, 512
        %vm706 = vcmp.lt.s32.totalorder %v674, 512
        %vm707 = vcmp.lt.s32.totalorder %v675, 512
        %vm708 = vcmp.lt.s32.totalorder %v676, 512
        %vm709 = vcmp.lt.s32.totalorder %v677, 512
        %vm710 = vcmp.lt.s32.totalorder %v678, 512
        %vm711 = vcmp.lt.s32.totalorder %v679, 512
        %vm712 = vcmp.lt.s32.totalorder %v680, 512
        %vm713 = vcmp.lt.s32.totalorder %v681, 512
        %vm714 = vcmp.lt.s32.totalorder %v682, 512
        %vm715 = vcmp.lt.s32.totalorder %v683, 512
        %vm716 = vcmp.lt.s32.totalorder %v684, 512
        %vm717 = vcmp.lt.s32.totalorder %v685, 512
        %vm718 = vcmp.lt.s32.totalorder %v686, 512
        %vm719 = vcmp.lt.s32.totalorder %v687, 512
        %vm720 = vcmp.lt.s32.totalorder %v688, 512
        %vm721 = vcmp.lt.s32.totalorder %v689, 512
        %v722 = vsel %vm690, 1, 0
        %v723 = vsel %vm691, 1, 0
        %v724 = vsel %vm692, 1, 0
        %v725 = vsel %vm693, 1, 0
        %v726 = vsel %vm694, 1, 0
        %v727 = vsel %vm695, 1, 0
        %v728 = vsel %vm696, 1, 0
        %v729 = vsel %vm697, 1, 0
        %v730 = vsel %vm698, 1, 0
        %v731 = vsel %vm699, 1, 0
        %v732 = vsel %vm700, 1, 0
        %v733 = vsel %vm701, 1, 0
        %v734 = vsel %vm702, 1, 0
        %v735 = vsel %vm703, 1, 0
        %v736 = vsel %vm704, 1, 0
        %v737 = vsel %vm705, 1, 0
        %v738 = vsel %vm706, 1, 0
        %v739 = vsel %vm707, 1, 0
        %v740 = vsel %vm708, 1, 0
        %v741 = vsel %vm709, 1, 0
        %v742 = vsel %vm710, 1, 0
        %v743 = vsel %vm711, 1, 0
        %v744 = vsel %vm712, 1, 0
        %v745 = vsel %vm713, 1, 0
        %v746 = vsel %vm714, 1, 0
        %v747 = vsel %vm715, 1, 0
        %v748 = vsel %vm716, 1, 0
        %v749 = vsel %vm717, 1, 0
        %v750 = vsel %vm718, 1, 0
        %v751 = vsel %vm719, 1, 0
        %v752 = vsel %vm720, 1, 0
        %v753 = vsel %vm721, 1, 0
        %v754 = vcvt.s32.f32 %v722
        %v755 = vcvt.s32.f32 %v723
        %v756 = vcvt.s32.f32 %v724
        %v757 = vcvt.s32.f32 %v725
        %v758 = vcvt.s32.f32 %v726
        %v759 = vcvt.s32.f32 %v727
        %v760 = vcvt.s32.f32 %v728
        %v761 = vcvt.s32.f32 %v729
        %v762 = vcvt.s32.f32 %v730
        %v763 = vcvt.s32.f32 %v731
        %v764 = vcvt.s32.f32 %v732
        %v765 = vcvt.s32.f32 %v733
        %v766 = vcvt.s32.f32 %v734
        %v767 = vcvt.s32.f32 %v735
        %v768 = vcvt.s32.f32 %v736
        %v769 = vcvt.s32.f32 %v737
        %v770 = vcvt.s32.f32 %v738
        %v771 = vcvt.s32.f32 %v739
        %v772 = vcvt.s32.f32 %v740
        %v773 = vcvt.s32.f32 %v741
        %v774 = vcvt.s32.f32 %v742
        %v775 = vcvt.s32.f32 %v743
        %v776 = vcvt.s32.f32 %v744
        %v777 = vcvt.s32.f32 %v745
        %v778 = vcvt.s32.f32 %v746
        %v779 = vcvt.s32.f32 %v747
        %v780 = vcvt.s32.f32 %v748
        %v781 = vcvt.s32.f32 %v749
        %v782 = vcvt.s32.f32 %v750
        %v783 = vcvt.s32.f32 %v751
        %v784 = vcvt.s32.f32 %v752
        %v785 = vcvt.s32.f32 %v753
        %v786 = vmul.f32 %v480, %v754
        %v787 = vmul.f32 %v482, %v755
        %v788 = vmul.f32 %v485, %v756
        %v789 = vmul.f32 %v487, %v757
        %v790 = vmul.f32 %v490, %v758
        %v791 = vmul.f32 %v492, %v759
        %v792 = vmul.f32 %v495, %v760
        %v793 = vmul.f32 %v497, %v761
        %v794 = vmul.f32 %v500, %v762
        %v795 = vmul.f32 %v502, %v763
        %v796 = vmul.f32 %v505, %v764
        %v797 = vmul.f32 %v507, %v765
        %v798 = vmul.f32 %v510, %v766
        %v799 = vmul.f32 %v512, %v767
        %v800 = vmul.f32 %v515, %v768
        %v801 = vmul.f32 %v517, %v769
        %v802 = vmul.f32 %v520, %v770
        %v803 = vmul.f32 %v522, %v771
        %v804 = vmul.f32 %v525, %v772
        %v805 = vmul.f32 %v527, %v773
        %v806 = vmul.f32 %v530, %v774
        %v807 = vmul.f32 %v532, %v775
        %v808 = vmul.f32 %v535, %v776
        %v809 = vmul.f32 %v537, %v777
        %v810 = vmul.f32 %v540, %v778
        %v811 = vmul.f32 %v542, %v779
        %v812 = vmul.f32 %v545, %v780
        %v813 = vmul.f32 %v547, %v781
        %v814 = vmul.f32 %v550, %v782
        %v815 = vmul.f32 %v552, %v783
        %v816 = vmul.f32 %v555, %v784
        %v817 = vmul.f32 %v557, %v785
        %v818 = vadd.f32 %v786, %v787
        %v819 = vadd.f32 %v818, %v788
        %v820 = vadd.f32 %v819, %v789
        %v821 = vadd.f32 %v820, %v790
        %v822 = vadd.f32 %v821, %v791
        %v823 = vadd.f32 %v822, %v792
        %v824 = vadd.f32 %v823, %v793
        %v825 = vadd.f32 %v824, %v794
        %v826 = vadd.f32 %v825, %v795
        %v827 = vadd.f32 %v826, %v796
        %v828 = vadd.f32 %v827, %v797
        %v829 = vadd.f32 %v828, %v798
        %v830 = vadd.f32 %v829, %v799
        %v831 = vadd.f32 %v830, %v800
        %v832 = vadd.f32 %v831, %v801
        %v833 = vadd.f32 %v832, %v802
        %v834 = vadd.f32 %v833, %v803
        %v835 = vadd.f32 %v834, %v804
        %v836 = vadd.f32 %v835, %v805
        %v837 = vadd.f32 %v836, %v806
        %v838 = vadd.f32 %v837, %v807
        %v839 = vadd.f32 %v838, %v808
        %v840 = vadd.f32 %v839, %v809
        %v841 = vadd.f32 %v840, %v810
        %v842 = vadd.f32 %v841, %v811
        %v843 = vadd.f32 %v842, %v812
        %v844 = vadd.f32 %v843, %v813
        %v845 = vadd.f32 %v844, %v814
        %v846 = vadd.f32 %v845, %v815
        %v847 = vadd.f32 %v846, %v816
        %v848 = vadd.f32 %v847, %v817
        %v849 = vrot.slane %v848, 4
        %v850 = vadd.f32 %v848, %v849
        %v851 = vrot.slane %v850, 2
        %v852 = vadd.f32 %v850, %v851
        %v853 = vrot.slane %v852, 1
        %v854 = vadd.f32 %v852, %v853
        %855 = vst [vmem:[%s258] sm:$0x1] %v854
        %v856 = vmul.f32 %v786, %v480
        %v857 = vmul.f32 %v787, %v482
        %v858 = vmul.f32 %v788, %v485
        %v859 = vmul.f32 %v789, %v487
        %v860 = vmul.f32 %v790, %v490
        %v861 = vmul.f32 %v791, %v492
        %v862 = vmul.f32 %v792, %v495
        %v863 = vmul.f32 %v793, %v497
        %v864 = vmul.f32 %v794, %v500
        %v865 = vmul.f32 %v795, %v502
        %v866 = vmul.f32 %v796, %v505
        %v867 = vmul.f32 %v797, %v507
        %v868 = vmul.f32 %v798, %v510
        %v869 = vmul.f32 %v799, %v512
        %v870 = vmul.f32 %v800, %v515
        %v871 = vmul.f32 %v801, %v517
        %v872 = vmul.f32 %v802, %v520
        %v873 = vmul.f32 %v803, %v522
        %v874 = vmul.f32 %v804, %v525
        %v875 = vmul.f32 %v805, %v527
        %v876 = vmul.f32 %v806, %v530
        %v877 = vmul.f32 %v807, %v532
        %v878 = vmul.f32 %v808, %v535
        %v879 = vmul.f32 %v809, %v537
        %v880 = vmul.f32 %v810, %v540
        %v881 = vmul.f32 %v811, %v542
        %v882 = vmul.f32 %v812, %v545
        %v883 = vmul.f32 %v813, %v547
        %v884 = vmul.f32 %v814, %v550
        %v885 = vmul.f32 %v815, %v552
        %v886 = vmul.f32 %v816, %v555
        %v887 = vmul.f32 %v817, %v557
        %v888 = vadd.f32 %v856, %v857
        %v889 = vadd.f32 %v888, %v858
        %v890 = vadd.f32 %v889, %v859
        %v891 = vadd.f32 %v890, %v860
        %v892 = vadd.f32 %v891, %v861
        %v893 = vadd.f32 %v892, %v862
        %v894 = vadd.f32 %v893, %v863
        %v895 = vadd.f32 %v894, %v864
        %v896 = vadd.f32 %v895, %v865
        %v897 = vadd.f32 %v896, %v866
        %v898 = vadd.f32 %v897, %v867
        %v899 = vadd.f32 %v898, %v868
        %v900 = vadd.f32 %v899, %v869
        %v901 = vadd.f32 %v900, %v870
        %v902 = vadd.f32 %v901, %v871
        %v903 = vadd.f32 %v902, %v872
        %v904 = vadd.f32 %v903, %v873
        %v905 = vadd.f32 %v904, %v874
        %v906 = vadd.f32 %v905, %v875
        %v907 = vadd.f32 %v906, %v876
        %v908 = vadd.f32 %v907, %v877
        %v909 = vadd.f32 %v908, %v878
        %v910 = vadd.f32 %v909, %v879
        %v911 = vadd.f32 %v910, %v880
        %v912 = vadd.f32 %v911, %v881
        %v913 = vadd.f32 %v912, %v882
        %v914 = vadd.f32 %v913, %v883
        %v915 = vadd.f32 %v914, %v884
        %v916 = vadd.f32 %v915, %v885
        %v917 = vadd.f32 %v916, %v886
        %v918 = vadd.f32 %v917, %v887
        %v919 = vrot.slane %v918, 4
        %v920 = vadd.f32 %v918, %v919
        %v921 = vrot.slane %v920, 2
        %v922 = vadd.f32 %v920, %v921
        %v923 = vrot.slane %v922, 1
        %v924 = vadd.f32 %v922, %v923
        %925 = vst [vmem:[%s264] sm:$0x1] %v924
        %s926 = sand.u32 %s107, 1
        %s927 = scalar_lea.sflag [#allocation3], %s926
        %s928 = sand.u32 %s107, 1
        %s929 = smul.addr %s928, 128
        %s930 = scalar_lea.vmem [#allocation2], %s929
        %s931 = sand.u32 %s22, 1
        %s932 = scalar_lea.sflag [#allocation5], %s931
        %s933 = sand.u32 %s135, 1
        %s934 = scalar_lea.vmem [#allocation4], %s933
        %s935 = sand.u32 %s22, 1
        %s936 = scalar_lea.sflag [#allocation5], %s935
        %s937 = sand.u32 %s163, 1
        %s938 = scalar_lea.vmem [#allocation6], %s937
        // Predicated region
        $region29: #{tpu_custom_call.1} parent=27 // pred_check
          %p939 = pneg %p117
        $region30: #{tpu_custom_call.1} parent=27 // pred_check_branch
          %941 = sbr.rel (%p939) target = $region32
        $region31: #{tpu_custom_call.1} parent=27 // pred_region
          %s942 = smul.u32 32, %s27
          %944 = vsyncadd %s927, 0
          %s945 = sadd.s32 %s28, %s942
          %s946 = smul.addr %s945, 4
          %s947 = scalar_lea.hbm %s2, %s946
          %s948 = sshll.u32 %s930, 4
          %s949 = int_to_ptr.vmem [resolvable:$true] %s948
          %s950 = sshll.u32 %s947, 4
          %s951 = int_to_ptr.hbm [resolvable:$true] %s950
          %956 = dma.vmem_to_hbm [thread:$0]  %s949, 2048, %s951, %s927, 64, 64, 4
        $region32: #{tpu_custom_call.1} parent=27 // pred_fallthru
          _
        // Predicated region
        $region33: #{tpu_custom_call.1} parent=27 // pred_check
          %p957 = pneg %p145
        $region34: #{tpu_custom_call.1} parent=27 // pred_check_branch
          %959 = sbr.rel (%p957) target = $region36
        $region35: #{tpu_custom_call.1} parent=27 // pred_region
          %961 = vsyncadd %s932, 0
          %s962 = sadd.s32 %s28, %s27
          %s963 = scalar_lea.hbm %s3, %s962
          %s965 = sshll.u32 %s934, 4
          %s966 = int_to_ptr.vmem [resolvable:$true] %s965
          %s967 = sshll.u32 %s963, 4
          %s968 = int_to_ptr.hbm [resolvable:$true] %s967
          %970 = dma.vmem_to_hbm [thread:$0]  %s966, 16, %s968, %s932
        $region36: #{tpu_custom_call.1} parent=27 // pred_fallthru
          _
        // Predicated region
        $region37: #{tpu_custom_call.1} parent=27 // pred_check
          %p971 = pneg %p173
        $region38: #{tpu_custom_call.1} parent=27 // pred_check_branch
          %973 = sbr.rel (%p971) target = $region40
        $region39: #{tpu_custom_call.1} parent=27 // pred_region
          %975 = vsyncadd %s936, 0
          %s976 = sadd.s32 %s28, %s27
          %s977 = scalar_lea.hbm %s4, %s976
          %s979 = sshll.u32 %s938, 4
          %s980 = int_to_ptr.vmem [resolvable:$true] %s979
          %s981 = sshll.u32 %s977, 4
          %s982 = int_to_ptr.hbm [resolvable:$true] %s981
          %984 = dma.vmem_to_hbm [thread:$0]  %s980, 16, %s982, %s936
        $region40: #{tpu_custom_call.1} parent=27 // pred_fallthru
          _
      $region28: #{tpu_custom_call.1} parent=5 // pred_fallthru
        _
      %p985 = scmp.le.s32.totalorder 2, %s17
      // Predicated region
      $region41: #{tpu_custom_call.1} parent=5 // pred_check
        %p986 = pneg %p985
      $region42: #{tpu_custom_call.1} parent=5 // pred_check_branch
        %988 = sbr.rel (%p986) target = $region44
      $region43: #{tpu_custom_call.1} parent=5 // pred_region
        %s989 = ssub.s32 %s17, 2
        // Predicated region
        $region45: #{tpu_custom_call.1} parent=43 // pred_check
          %p990 = pneg %p123
        $region46: #{tpu_custom_call.1} parent=43 // pred_check_branch
          %992 = sbr.rel (%p990) target = $region48
        $region47: #{tpu_custom_call.1} parent=43 // pred_region
          %s993 = sand.u32 %s108, 1
          %s994 = scalar_lea.sflag [#allocation3], %s993
          %s995 = sand.u32 %s108, 1
          %s996 = smul.addr %s995, 128
          %s997 = scalar_lea.vmem [#allocation2], %s996
          %999 = dma.done %s994, 2048
        $region48: #{tpu_custom_call.1} parent=43 // pred_fallthru
          _
        // Predicated region
        $region49: #{tpu_custom_call.1} parent=43 // pred_check
          %p1000 = pneg %p151
        $region50: #{tpu_custom_call.1} parent=43 // pred_check_branch
          %1002 = sbr.rel (%p1000) target = $region52
        $region51: #{tpu_custom_call.1} parent=43 // pred_region
          %s1003 = sand.u32 %s23, 1
          %s1004 = scalar_lea.sflag [#allocation5], %s1003
          %s1005 = sand.u32 %s136, 1
          %s1006 = scalar_lea.vmem [#allocation4], %s1005
          %1008 = dma.done %s1004, 16
        $region52: #{tpu_custom_call.1} parent=43 // pred_fallthru
          _
        // Predicated region
        $region53: #{tpu_custom_call.1} parent=43 // pred_check
          %p1009 = pneg %p179
        $region54: #{tpu_custom_call.1} parent=43 // pred_check_branch
          %1011 = sbr.rel (%p1009) target = $region56
        $region55: #{tpu_custom_call.1} parent=43 // pred_region
          %s1012 = sand.u32 %s23, 1
          %s1013 = scalar_lea.sflag [#allocation5], %s1012
          %s1014 = sand.u32 %s164, 1
          %s1015 = scalar_lea.vmem [#allocation6], %s1014
          %1017 = dma.done %s1013, 16
        $region56: #{tpu_custom_call.1} parent=43 // pred_fallthru
          _
      $region44: #{tpu_custom_call.1} parent=5 // pred_fallthru
        _
    $region6: #{tpu_custom_call.1} parent=1 // loop_footer
      %s21 = sadd.s32 1, %s17
    $region7: #{tpu_custom_call.1} parent=1 // loop_footer_branch
      %16 = sbr.rel target = $region3
    $region8: #{tpu_custom_call.1} parent=1 // loop_exit
      _
    %1018 = vsyncpa [#allocation3], 1
    %s1019 = scalar_lea.sflag [#allocation3], 1
    %1020 = vsyncpa %s1019, 1
    %1021 = vsyncpa [#allocation5], 1
    %s1022 = scalar_lea.sflag [#allocation5], 1
    %1023 = vsyncpa %s1022, 1

</llo_original>
